<compile_context>
chip_gen: v6e
topology: v6e:2x2x1
jax: 0.10.0
libtpu: 0.0.40
codegen_flags: <defaults>
</compile_context>

<pallas_src>
import jax
import jax.numpy as jnp
from jax.experimental import pallas as pl
from jax.experimental.pallas import tpu as pltpu


def _rope_kernel(pos_ref, inv_ref, q_ref, k_ref, qo_ref, ko_ref):
    # pos_ref: (B_t, S_t, 1)  float32  -- positions for this (batch, seq) tile
    # inv_ref: (1, 1, Dh)     float32  -- inverse frequencies, Dh = D // 2
    # q_ref/k_ref/qo_ref/ko_ref: (B_t, H, S_t, D)
    pos = pos_ref[...]                       # (B_t, S_t, 1)
    inv = inv_ref[...]                       # (1, 1, Dh)
    freqs = pos * inv                        # (B_t, S_t, Dh) == t[:, None] * inv_freq[None, :]

    # Half-width transcendentals; duplicate (and sign-fold) on the small tensor only.
    cos_h = jnp.cos(freqs)                   # (B_t, S_t, Dh) f32
    sin_h = jnp.sin(freqs)

    out_dtype = qo_ref.dtype                 # matches torch's .to(self.dtype) before the FMA
    cos = jnp.concatenate([cos_h, cos_h], axis=-1).astype(out_dtype)[:, None]          # (B_t,1,S_t,D)
    sin_signed = jnp.concatenate([-sin_h, sin_h], axis=-1).astype(out_dtype)[:, None]  # (B_t,1,S_t,D)

    D = q_ref.shape[-1]
    Dh = D // 2

    def rot(x):
        # unsigned rotate: concat(x2, x1); the rotate_half sign lives in sin_signed.
        if D % 128 == 0:
            # lane-dense case (production head_dim=128): single XLU rotate, VALU-free.
            return pltpu.roll(x, shift=Dh, axis=-1)
        return jnp.concatenate([x[..., Dh:], x[..., :Dh]], axis=-1)

    q = q_ref[...]                           # (B_t, H, S_t, D)
    k = k_ref[...]
    # cos / sin_signed (B_t, 1, S_t, D) broadcast over the H axis.
    qo_ref[...] = q * cos + rot(q) * sin_signed
    ko_ref[...] = k * cos + rot(k) * sin_signed


def _pick_tiles(B, S, H, D, itemsize, budget_bytes=16 * 1024 * 1024):
    """(b_tile, s_tile) whose double-buffered Q/K in+out footprint fits budget_bytes.

    16 MiB of pipeline buffers keeps blocks well past the ~85% HBM-roofline plateau
    while leaving headroom for f32 intermediates under a 48 MiB VMEM limit (v7x-safe).
    """
    pos_bytes = H * D * itemsize                       # one (b, s) position, one tensor, all heads
    max_pos = max(1, budget_bytes // (pos_bytes * 4 * 2))   # 4 big tensors, 2-deep pipeline buffers
    if max_pos < S:
        s_tile = max(8, (max_pos // 8) * 8)            # sublane alignment
        return 1, min(s_tile, S)
    # Whole sequence fits one block: fuse batches to amortise per-step overhead
    # (important for decode-style shapes with large B and tiny S).
    b_tile = max(1, min(B, max_pos // S))
    return b_tile, S


def llama_rotary_embedding(Q, K, position_ids, inv_freq, seq_len=None, tiles=None):
    """Q, K: [B, H, S, D]; position_ids: [B, S] int; inv_freq: [D//2] float32.

    seq_len is accepted for API parity with the torch module; it only bounds the cache
    there, while here cos/sin are computed directly from position_ids.
    """
    B, H, S, D = Q.shape
    assert K.shape == Q.shape and K.dtype == Q.dtype
    assert position_ids.shape == (B, S)
    assert D % 2 == 0
    Dh = D // 2

    if tiles is None:
        b_tile, s_tile = _pick_tiles(B, S, H, D, jnp.dtype(Q.dtype).itemsize)
    else:
        b_tile, s_tile = tiles
    grid = (pl.cdiv(B, b_tile), pl.cdiv(S, s_tile))

    # Glue: TPU-friendly >=2D layouts (positions land on sublanes, freqs on lanes).
    pos_f32 = position_ids.astype(jnp.float32).reshape(B, S, 1)
    inv_f32 = inv_freq.astype(jnp.float32).reshape(1, 1, Dh)

    qk_spec = pl.BlockSpec((b_tile, H, s_tile, D), lambda b, s: (b, 0, s, 0))
    pos_spec = pl.BlockSpec((b_tile, s_tile, 1), lambda b, s: (b, s, 0))
    inv_spec = pl.BlockSpec((1, 1, Dh), lambda b, s: (0, 0, 0))   # constant block

    out_shape = (
        jax.ShapeDtypeStruct((B, H, S, D), Q.dtype),
        jax.ShapeDtypeStruct((B, H, S, D), K.dtype),
    )

    return pl.pallas_call(
        _rope_kernel,
        out_shape=out_shape,
        grid_spec=pltpu.PrefetchScalarGridSpec(
            num_scalar_prefetch=0,
            grid=grid,
            in_specs=[pos_spec, inv_spec, qk_spec, qk_spec],
            out_specs=[qk_spec, qk_spec],
        ),
        input_output_aliases={2: 0, 3: 1},   # Q -> q_embed, K -> k_embed (in-place capable)
        compiler_params=pltpu.CompilerParams(
            dimension_semantics=("parallel", "parallel"),
            vmem_limit_bytes=48 * 1024 * 1024,
        ),
    )(pos_f32, inv_f32, Q, K)


def _reference(Q, K, position_ids, inv_freq, seq_len):
    # Pure-JAX replica of the torch forward, for verification.
    t = jnp.arange(seq_len, dtype=jnp.float32)
    freqs = jnp.einsum("i,j->ij", t, inv_freq)
    emb = jnp.concatenate([freqs, freqs], axis=-1)
    cos_cached = jnp.cos(emb).astype(Q.dtype)
    sin_cached = jnp.sin(emb).astype(Q.dtype)
    cos = cos_cached[position_ids][:, None, :, :]   # [B, 1, S, D]
    sin = sin_cached[position_ids][:, None, :, :]

    def rot(x):
        dh = x.shape[-1] // 2
        return jnp.concatenate([-x[..., dh:], x[..., :dh]], axis=-1)

    return Q * cos + rot(Q) * sin, K * cos + rot(K) * sin


if __name__ == "__main__":
    B, H, S, D = 2, 4, 16, 64
    seq_len = 32
    base = 10000

    key = jax.random.PRNGKey(0)
    kq, kk, kp = jax.random.split(key, 3)

    Q = jax.random.normal(kq, (B, H, S, D), dtype=jnp.float32).astype(jnp.bfloat16)
    K = jax.random.normal(kk, (B, H, S, D), dtype=jnp.float32).astype(jnp.bfloat16)
    position_ids = jax.random.randint(kp, (B, S), 0, seq_len, dtype=jnp.int32)

    # Deterministic "parameter" from __init__: inv_freq = 1 / base^(arange(0, D, 2)/D)
    inv_freq = 1.0 / (base ** (jnp.arange(0, D, 2, dtype=jnp.float32) / D))

    # Reference first (inputs stay pristine regardless of output aliasing).
    q_ref, k_ref = _reference(Q, K, position_ids, inv_freq, seq_len)

    # Default path: auto tiling (whole problem fits one fused block here).
    q_emb, k_emb = llama_rotary_embedding(Q, K, position_ids, inv_freq, seq_len=seq_len)
    # Forced multi-tile grid to exercise the pipelined (2, 2)-grid path as well.
    q_emb2, k_emb2 = llama_rotary_embedding(
        Q, K, position_ids, inv_freq, seq_len=seq_len, tiles=(1, 8))
    jax.block_until_ready((q_emb, k_emb, q_emb2, k_emb2))

    def close(a, b):
        return jnp.allclose(a.astype(jnp.float32), b.astype(jnp.float32), atol=3e-2, rtol=3e-2)

    assert q_emb.shape == (B, H, S, D) and q_emb.dtype == jnp.bfloat16
    assert k_emb.shape == (B, H, S, D) and k_emb.dtype == jnp.bfloat16
    assert close(q_emb, q_ref) and close(k_emb, k_ref)
    assert close(q_emb2, q_ref) and close(k_emb2, k_ref)

    print("KERNEL_OK")
</pallas_src>

<mosaic_0001>
module attributes {stable_mosaic.version = 11 : i64} {
  func.func @_rope_kernel(%arg0: i32, %arg1: i32, %arg2: memref<2x16x1xf32, #tpu.memory_space<vmem>>, %arg3: memref<1x1x32xf32, #tpu.memory_space<vmem>>, %arg4: memref<2x4x16x64xbf16, #tpu.memory_space<vmem>>, %arg5: memref<2x4x16x64xbf16, #tpu.memory_space<vmem>>, %arg6: memref<2x4x16x64xbf16, #tpu.memory_space<vmem>>, %arg7: memref<2x4x16x64xbf16, #tpu.memory_space<vmem>>) attributes {dimension_semantics = [#tpu.dimension_semantics<parallel>, #tpu.dimension_semantics<parallel>], iteration_bounds = array<i64: 1, 1>, scalar_prefetch = 0 : i64, scratch_operands = 0 : i64, tpu.core_type = #tpu.core_type<tc>, window_params = [{transform_indices = @transform_0, window_bounds = array<i64: 2, 16, 1>}, {pipeline_mode = #tpu.pipeline_mode<synchronous>, transform_indices = @transform_1, window_bounds = array<i64: 1, 1, 32>}, {transform_indices = @transform_2, window_bounds = array<i64: 2, 4, 16, 64>}, {transform_indices = @transform_3, window_bounds = array<i64: 2, 4, 16, 64>}, {transform_indices = @transform_4, window_bounds = array<i64: 2, 4, 16, 64>}, {transform_indices = @transform_5, window_bounds = array<i64: 2, 4, 16, 64>}]} {
    %c0 = arith.constant 0 : index
    %c0_0 = arith.constant 0 : index
    %c0_1 = arith.constant 0 : index
    %0 = vector.load %arg2[%c0, %c0_0, %c0_1] : memref<2x16x1xf32, #tpu.memory_space<vmem>>, vector<2x16x1xf32>
    %c0_2 = arith.constant 0 : index
    %c0_3 = arith.constant 0 : index
    %c0_4 = arith.constant 0 : index
    %1 = vector.load %arg3[%c0_2, %c0_3, %c0_4] : memref<1x1x32xf32, #tpu.memory_space<vmem>>, vector<1x1x32xf32>
    %2 = vector.broadcast %0 : vector<2x16x1xf32> to vector<2x16x32xf32>
    %3 = vector.broadcast %1 : vector<1x1x32xf32> to vector<2x16x32xf32>
    %4 = arith.mulf %2, %3 : vector<2x16x32xf32>
    %5 = math.cos %4 : vector<2x16x32xf32>
    %6 = math.sin %4 : vector<2x16x32xf32>
    %7 = tpu.concatenate %5, %5 in 2 : vector<2x16x32xf32>, vector<2x16x32xf32> -> vector<2x16x64xf32>
    %8 = arith.truncf %7 : vector<2x16x64xf32> to vector<2x16x64xbf16>
    %9 = vector.shape_cast %8 : vector<2x16x64xbf16> to vector<2x1x16x64xbf16>
    %cst = arith.constant 0.000000e+00 : f32
    %10 = vector.broadcast %cst : f32 to vector<2x16x32xf32>
    %11 = arith.subf %10, %6 : vector<2x16x32xf32>
    %12 = tpu.concatenate %11, %6 in 2 : vector<2x16x32xf32>, vector<2x16x32xf32> -> vector<2x16x64xf32>
    %13 = arith.truncf %12 : vector<2x16x64xf32> to vector<2x16x64xbf16>
    %14 = vector.shape_cast %13 : vector<2x16x64xbf16> to vector<2x1x16x64xbf16>
    %c0_5 = arith.constant 0 : index
    %c0_6 = arith.constant 0 : index
    %c0_7 = arith.constant 0 : index
    %c0_8 = arith.constant 0 : index
    %15 = vector.load %arg4[%c0_5, %c0_6, %c0_7, %c0_8] : memref<2x4x16x64xbf16, #tpu.memory_space<vmem>>, vector<2x4x16x64xbf16>
    %c0_9 = arith.constant 0 : index
    %c0_10 = arith.constant 0 : index
    %c0_11 = arith.constant 0 : index
    %c0_12 = arith.constant 0 : index
    %16 = vector.load %arg5[%c0_9, %c0_10, %c0_11, %c0_12] : memref<2x4x16x64xbf16, #tpu.memory_space<vmem>>, vector<2x4x16x64xbf16>
    %17 = vector.broadcast %9 : vector<2x1x16x64xbf16> to vector<2x4x16x64xbf16>
    %18 = arith.mulf %15, %17 : vector<2x4x16x64xbf16>
    %19 = vector.extract_strided_slice %15 {offsets = [0, 0, 0, 32], sizes = [2, 4, 16, 32], strides = [1, 1, 1, 1]} : vector<2x4x16x64xbf16> to vector<2x4x16x32xbf16>
    %20 = vector.extract_strided_slice %15 {offsets = [0, 0, 0, 0], sizes = [2, 4, 16, 32], strides = [1, 1, 1, 1]} : vector<2x4x16x64xbf16> to vector<2x4x16x32xbf16>
    %21 = tpu.concatenate %19, %20 in 3 : vector<2x4x16x32xbf16>, vector<2x4x16x32xbf16> -> vector<2x4x16x64xbf16>
    %22 = vector.broadcast %14 : vector<2x1x16x64xbf16> to vector<2x4x16x64xbf16>
    %23 = arith.mulf %21, %22 : vector<2x4x16x64xbf16>
    %24 = arith.addf %18, %23 : vector<2x4x16x64xbf16>
    %c0_13 = arith.constant 0 : index
    %c0_14 = arith.constant 0 : index
    %c0_15 = arith.constant 0 : index
    %c0_16 = arith.constant 0 : index
    %25 = vector.load %arg6[%c0_13, %c0_14, %c0_15, %c0_16] : memref<2x4x16x64xbf16, #tpu.memory_space<vmem>>, vector<2x4x16x64xbf16>
    tpu.vector_store %arg6[%c0_13, %c0_14, %c0_15, %c0_16], %24 {strides = array<i32>} : memref<2x4x16x64xbf16, #tpu.memory_space<vmem>>, vector<2x4x16x64xbf16>,
    %26 = vector.broadcast %9 : vector<2x1x16x64xbf16> to vector<2x4x16x64xbf16>
    %27 = arith.mulf %16, %26 : vector<2x4x16x64xbf16>
    %28 = vector.extract_strided_slice %16 {offsets = [0, 0, 0, 32], sizes = [2, 4, 16, 32], strides = [1, 1, 1, 1]} : vector<2x4x16x64xbf16> to vector<2x4x16x32xbf16>
    %29 = vector.extract_strided_slice %16 {offsets = [0, 0, 0, 0], sizes = [2, 4, 16, 32], strides = [1, 1, 1, 1]} : vector<2x4x16x64xbf16> to vector<2x4x16x32xbf16>
    %30 = tpu.concatenate %28, %29 in 3 : vector<2x4x16x32xbf16>, vector<2x4x16x32xbf16> -> vector<2x4x16x64xbf16>
    %31 = vector.broadcast %14 : vector<2x1x16x64xbf16> to vector<2x4x16x64xbf16>
    %32 = arith.mulf %30, %31 : vector<2x4x16x64xbf16>
    %33 = arith.addf %27, %32 : vector<2x4x16x64xbf16>
    %c0_17 = arith.constant 0 : index
    %c0_18 = arith.constant 0 : index
    %c0_19 = arith.constant 0 : index
    %c0_20 = arith.constant 0 : index
    %34 = vector.load %arg7[%c0_17, %c0_18, %c0_19, %c0_20] : memref<2x4x16x64xbf16, #tpu.memory_space<vmem>>, vector<2x4x16x64xbf16>
    tpu.vector_store %arg7[%c0_17, %c0_18, %c0_19, %c0_20], %33 {strides = array<i32>} : memref<2x4x16x64xbf16, #tpu.memory_space<vmem>>, vector<2x4x16x64xbf16>,
    return
  }
  func.func @transform_0(%arg0: i32, %arg1: i32) -> (i32, i32, i32) {
    %c0_i32 = arith.constant 0 : i32
    %c0_i32_0 = arith.constant 0 : i32
    return %arg0, %arg1, %c0_i32 : i32, i32, i32
  }
  func.func @transform_1(%arg0: i32, %arg1: i32) -> (i32, i32, i32) {
    %c0_i32 = arith.constant 0 : i32
    %c0_i32_0 = arith.constant 0 : i32
    %c0_i32_1 = arith.constant 0 : i32
    %c0_i32_2 = arith.constant 0 : i32
    return %c0_i32, %c0_i32_0, %c0_i32_1 : i32, i32, i32
  }
  func.func @transform_2(%arg0: i32, %arg1: i32) -> (i32, i32, i32, i32) {
    %c0_i32 = arith.constant 0 : i32
    %c0_i32_0 = arith.constant 0 : i32
    %c0_i32_1 = arith.constant 0 : i32
    return %arg0, %c0_i32, %arg1, %c0_i32_0 : i32, i32, i32, i32
  }
  func.func @transform_3(%arg0: i32, %arg1: i32) -> (i32, i32, i32, i32) {
    %c0_i32 = arith.constant 0 : i32
    %c0_i32_0 = arith.constant 0 : i32
    %c0_i32_1 = arith.constant 0 : i32
    return %arg0, %c0_i32, %arg1, %c0_i32_0 : i32, i32, i32, i32
  }
  func.func @transform_4(%arg0: i32, %arg1: i32) -> (i32, i32, i32, i32) {
    %c0_i32 = arith.constant 0 : i32
    %c0_i32_0 = arith.constant 0 : i32
    %c0_i32_1 = arith.constant 0 : i32
    return %arg0, %c0_i32, %arg1, %c0_i32_0 : i32, i32, i32, i32
  }
  func.func @transform_5(%arg0: i32, %arg1: i32) -> (i32, i32, i32, i32) {
    %c0_i32 = arith.constant 0 : i32
    %c0_i32_0 = arith.constant 0 : i32
    %c0_i32_1 = arith.constant 0 : i32
    return %arg0, %c0_i32, %arg1, %c0_i32_0 : i32, i32, i32, i32
  }
}

</mosaic_0001>

<llo_original>
// kernel: tpu_custom_call.1
$region0: #{tpu_custom_call.1}
  #allocation0 [shape = 'u32[]', space=smem, size = 0x4, offset = 0x4, fixed_abs, tag = 'smem constant byte address 0x4 - core index']
  #allocation1 [shape = 'u32[144,128]{1,0:T(1,128)}', space=vmem, size = 0x12000, scoped, tag = 'internal scratch']
  %s0 = inlined_call_operand.vmem [shape: f32[2,16,1], index: 0, kind: input, shape index: {}]
  %s1 = inlined_call_operand.vmem [shape: f32[1,1,32], index: 1, kind: input, shape index: {}]
  %s2 = inlined_call_operand.hbm [shape: bf16[2,4,16,64], index: 2, kind: input, shape index: {}, may-alias: {2,4}]
  %s3 = inlined_call_operand.hbm [shape: bf16[2,4,16,64], index: 3, kind: input, shape index: {}, may-alias: {3,5}]
  %s4 = inlined_call_operand.hbm [shape: bf16[2,4,16,64], index: 4, kind: output, shape index: {0}, may-alias: {2,4}]
  %s5 = inlined_call_operand.hbm [shape: bf16[2,4,16,64], index: 5, kind: output, shape index: {1}, may-alias: {3,5}]
  %6 = xla_tuple %s4, %s5
  %s7 = sld [smem:[#allocation0]]
  $region42: #{tpu_custom_call.1} parent=0
    _
  %s9 = ssub.s32 1, %s7
  %s10 = scalar_select 0, %s9, %s7
  $region1: #{tpu_custom_call.1} parent=0
    #allocation2 [shape = 'u8[32768]{0}', space=vmem, size = 0x8000, scoped, tag = 'input window, operand 2, single buffered']
    #allocation3 [shape = 's32[1]{0}', space=sflag, size = 0x4, scoped, tag = 'scoped memory for tpu_custom_call.1']
    #allocation4 [shape = 's32[1]{0}', space=sflag, size = 0x4, scoped, tag = 'scoped memory for tpu_custom_call.1']
    #allocation5 [shape = 'u8[32768]{0}', space=vmem, size = 0x8000, scoped, tag = 'input window, operand 3, single buffered']
    #allocation6 [shape = 's32[1]{0}', space=sflag, size = 0x4, scoped, tag = 'scoped memory for tpu_custom_call.1']
    #allocation7 [shape = 'u8[32768]{0}', space=vmem, size = 0x8000, scoped, tag = 'output window, operand 0, single buffered']
    #allocation8 [shape = 'u8[32768]{0}', space=vmem, size = 0x8000, scoped, tag = 'output window, operand 1, single buffered']
    #allocation9 [shape = 's32[1]{0}', space=sflag, size = 0x4, scoped, tag = 'scoped memory for tpu_custom_call.1']
    %11 = vsyncpa [#allocation3], 0
    %12 = vsyncpa [#allocation6], 0
    %13 = vsyncpa [#allocation4], 0
    %14 = vsyncpa [#allocation9], 0
    // Predicated region
    $region2: #{tpu_custom_call.1} parent=1 // pred_check
      _
    $region3: #{tpu_custom_call.1} parent=1 // pred_check_branch
      %16 = sbr.rel (0) target = $region5
    $region4: #{tpu_custom_call.1} parent=1 // pred_region
      _
    $region5: #{tpu_custom_call.1} parent=1 // pred_fallthru
      _
    // Predicated region
    $region6: #{tpu_custom_call.1} parent=1 // pred_check
      _
    $region7: #{tpu_custom_call.1} parent=1 // pred_check_branch
      %18 = sbr.rel (0) target = $region9
    $region8: #{tpu_custom_call.1} parent=1 // pred_region
      _
    $region9: #{tpu_custom_call.1} parent=1 // pred_fallthru
      _
    // Predicated region
    $region10: #{tpu_custom_call.1} parent=1 // pred_check
      _
    $region11: #{tpu_custom_call.1} parent=1 // pred_check_branch
      %20 = sbr.rel (0) target = $region13
    $region12: #{tpu_custom_call.1} parent=1 // pred_region
      %s22 = ssub.s32 1024, 1024
      %23 = vsyncadd [#allocation3], %s22
      %s24 = sshll.u32 [#allocation2], 4
      %s25 = int_to_ptr.vmem [resolvable:$true] %s24
      %30 = dma.hbm_to_vmem [thread:$0]  %s2, 1024, %s25, [#allocation3], 64, 64, 4
    $region13: #{tpu_custom_call.1} parent=1 // pred_fallthru
      _
    // Predicated region
    $region14: #{tpu_custom_call.1} parent=1 // pred_check
      _
    $region15: #{tpu_custom_call.1} parent=1 // pred_check_branch
      %32 = sbr.rel (0) target = $region17
    $region16: #{tpu_custom_call.1} parent=1 // pred_region
      %s34 = ssub.s32 1024, 1024
      %35 = vsyncadd [#allocation6], %s34
      %s36 = sshll.u32 [#allocation5], 4
      %s37 = int_to_ptr.vmem [resolvable:$true] %s36
      %42 = dma.hbm_to_vmem [thread:$0]  %s3, 1024, %s37, [#allocation6], 64, 64, 4
    $region17: #{tpu_custom_call.1} parent=1 // pred_fallthru
      _
    // Predicated region
    $region18: #{tpu_custom_call.1} parent=1 // pred_check
      _
    $region19: #{tpu_custom_call.1} parent=1 // pred_check_branch
      %44 = sbr.rel (0) target = $region21
    $region20: #{tpu_custom_call.1} parent=1 // pred_region
      %45 = dma.done [#allocation3], 1024
    $region21: #{tpu_custom_call.1} parent=1 // pred_fallthru
      _
    // Predicated region
    $region22: #{tpu_custom_call.1} parent=1 // pred_check
      _
    $region23: #{tpu_custom_call.1} parent=1 // pred_check_branch
      %47 = sbr.rel (0) target = $region25
    $region24: #{tpu_custom_call.1} parent=1 // pred_region
      %48 = dma.done [#allocation6], 1024
    $region25: #{tpu_custom_call.1} parent=1 // pred_fallthru
      _
    %v49 = vld [vmem:[%s0] sm:$0xff]
    %v50 = vld [vmem:[%s0 + $0x8] sm:$0xff]
    %v51 = vld [vmem:[%s0 + $0x10] sm:$0xff]
    %v52 = vld [vmem:[%s0 + $0x18] sm:$0xff]
    %v53 = vld [vmem:[%s1] sm:$0x1]
    %55 = vset.pattern.permute.xlu0 0
    %56 = vperm.xlu0 %55, %v49
    %v57 = vpop.permute.xlu0 %56
    %60 = vset.pattern.permute.xlu0 0
    %61 = vperm.xlu0 %60, %v50
    %v62 = vpop.permute.xlu0 %61
    %65 = vset.pattern.permute.xlu0 0
    %66 = vperm.xlu0 %65, %v51
    %v67 = vpop.permute.xlu0 %66
    %70 = vset.pattern.permute.xlu0 0
    %71 = vperm.xlu0 %70, %v52
    %v72 = vpop.permute.xlu0 %71
    %v75 = vlaneseq
    %v76 = vshrl.u32 %v75, 7
    %v77 = vsub.s32 0, %v76
    %v78 = vrot.slane %v53, %v77
    %v80 = vmul.f32 %v57, %v78
    %v81 = vmul.f32 %v62, %v78
    %v82 = vmul.f32 %v67, %v78
    %v83 = vmul.f32 %v72, %v78
    %v84 = vand.u32 2147483647, %v80
    %vm85 = vcmp.le.f32.partialorder %v84, 0.7853982
    %vm86 = vcmp.lt.s32.totalorder %v80, 0
    %v87 = vand.u32 %v80, 2139095040
    %v88 = vshrl.u32 %v87, 23
    %v89 = vsub.s32 %v88, 127
    %v90 = vand.u32 2147483647, %v80
    %v91 = vand.u32 %v90, 8388607
    %v92 = vor.u32 %v91, 8388608
    %v93 = vsub.s32 0, %v92
    %v94 = vadd.s32 %v89, 1
    %vm95 = vcmp.gt.s32.totalorder %v94, 0
    %v96 = vsel %vm95, %v94, 0
    %v97 = vshrl.u32 %v96, 5
    %v98 = vand.u32 %v96, 31
    %v99 = vsub.s32 32, %v98
    %v100 = vshrl.u32 683565275, %v99
    %v101 = vshll.u32 683565275, %v98
    %v102 = vshrl.u32 2475754826, %v99
    %v103 = vor.u32 %v101, %v102
    %v104 = vshll.u32 2475754826, %v98
    %v105 = vshrl.u32 2131351028, %v99
    %v106 = vor.u32 %v104, %v105
    %v107 = vshll.u32 2131351028, %v98
    %v108 = vshrl.u32 2102212464, %v99
    %v109 = vor.u32 %v107, %v108
    %v110 = vshll.u32 2102212464, %v98
    %v111 = vshrl.u32 920167782, %v99
    %v112 = vor.u32 %v110, %v111
    %v113 = vshll.u32 920167782, %v98
    %v114 = vshrl.u32 1326507024, %v99
    %v115 = vor.u32 %v113, %v114
    %vm116 = vcmp.lt.s32.totalorder %v97, 1
    %vm117 = vcmp.lt.s32.totalorder %v97, 2
    %vm118 = vcmp.lt.s32.totalorder %v97, 3
    %vm119 = vcmp.lt.s32.totalorder %v97, 4
    %v120 = vsel %vm116, %v100, %v103
    %v121 = vsel %vm119, %v109, 2102212464
    %v122 = vsel %vm118, %v106, %v121
    %v123 = vsel %vm117, %v120, %v122
    %v124 = vsel %vm116, %v103, %v106
    %v125 = vsel %vm119, %v112, 920167782
    %v126 = vsel %vm118, %v109, %v125
    %v127 = vsel %vm117, %v124, %v126
    %v128 = vsel %vm116, %v106, %v109
    %v129 = vsel %vm119, %v115, 1326507024
    %v130 = vsel %vm118, %v112, %v129
    %v131 = vsel %vm117, %v128, %v130
    %v132 = vshll.u32 %v92, 8
    %v133 = vmul.u32.u64.compose %v132, %v131
    %v134 = vextract.low.u32 %v133
    %v135 = vextract.high.u32 %v133
    %v136 = vmul.u32.u64.compose %v132, %v127
    %v137 = vextract.low.u32 %v136
    %v138 = vextract.high.u32 %v136
    %v139 = vmul.u32 %v132, %v123
    %v140 = vadd.s32 %v135, %v137
    %vm141 = vc.u32 %v135, %v137
    %v142 = vadd.s32 %v138, 1
    %v143 = vsel %vm141, %v142, %v138
    %v144 = vadd.s32 %v139, %v143
    %v145 = vadd.s32 %v144, 536870912
    %v146 = vshrl.u32 %v145, 30
    %v147 = vshll.u32 %v146, 30
    %v148 = vsub.s32 %v144, %v147
    %vm149 = vcmp.lt.s32.totalorder %v148, 0
    %v150 = vsub.s32 0, %v148
    %v151 = vsel %vm149, %v150, %v148
    %v152 = vclz %v151
    %v153 = vsub.s32 %v152, 2
    %vm154 = vcmp.gt.s32.totalorder 0, %v153
    %v155 = vsel %vm154, 0, %v153
    %v156 = vsub.s32 32, %v155
    %v157 = vshll.u32 %v148, %v155
    %v158 = vshrl.u32 %v140, %v156
    %v159 = vor.u32 %v157, %v158
    %v160 = vsub.s32 4294967266, %v155
    %v161 = vadd.s32 %v160, 127
    %v162 = vshll.u32 %v161, 23
    %v163 = vor.u32 4788187, %v162
    %v164 = vand.u32 2147483647, %v163
    %v166 = vcvt.s32.f32 %v159
    %v167 = vmul.f32 %v166, %v164
    %v168 = vxor.u32 %v167, 2147483648
    %v169 = vsel %vm86, %v168, %v167
    %v170 = vsub.s32 4, %v146
    %v171 = vsel %vm86, %v170, %v146
    %v172 = vsel %vm85, %v80, %v169
    %v173 = vsel %vm85, 0, %v171
    %v174 = vcosq.f32.pop %v172
    %v175 = vsinq.f32.pop %v172
    %vm176 = vweird.f32 %v80
    %v177 = vand.u32 %v173, 3
    %vm178 = vcmp.lt.s32.totalorder %v177, 2
    %vm179 = vcmp.eq.s32.totalorder %v177, 0
    %v180 = vxor.u32 %v175, 2147483648
    %v181 = vsel %vm179, %v174, %v180
    %vm182 = vcmp.eq.s32.totalorder %v177, 2
    %v183 = vxor.u32 %v174, 2147483648
    %v184 = vsel %vm182, %v183, %v175
    %v185 = vsel %vm178, %v181, %v184
    %v186 = vsel %vm176, nan, %v185
    %v187 = vand.u32 2147483647, %v81
    %vm188 = vcmp.le.f32.partialorder %v187, 0.7853982
    %vm189 = vcmp.lt.s32.totalorder %v81, 0
    %v190 = vand.u32 %v81, 2139095040
    %v191 = vshrl.u32 %v190, 23
    %v192 = vsub.s32 %v191, 127
    %v193 = vand.u32 2147483647, %v81
    %v194 = vand.u32 %v193, 8388607
    %v195 = vor.u32 %v194, 8388608
    %v196 = vsub.s32 0, %v195
    %v197 = vadd.s32 %v192, 1
    %vm198 = vcmp.gt.s32.totalorder %v197, 0
    %v199 = vsel %vm198, %v197, 0
    %v200 = vshrl.u32 %v199, 5
    %v201 = vand.u32 %v199, 31
    %v202 = vsub.s32 32, %v201
    %v203 = vshrl.u32 683565275, %v202
    %v204 = vshll.u32 683565275, %v201
    %v205 = vshrl.u32 2475754826, %v202
    %v206 = vor.u32 %v204, %v205
    %v207 = vshll.u32 2475754826, %v201
    %v208 = vshrl.u32 2131351028, %v202
    %v209 = vor.u32 %v207, %v208
    %v210 = vshll.u32 2131351028, %v201
    %v211 = vshrl.u32 2102212464, %v202
    %v212 = vor.u32 %v210, %v211
    %v213 = vshll.u32 2102212464, %v201
    %v214 = vshrl.u32 920167782, %v202
    %v215 = vor.u32 %v213, %v214
    %v216 = vshll.u32 920167782, %v201
    %v217 = vshrl.u32 1326507024, %v202
    %v218 = vor.u32 %v216, %v217
    %vm219 = vcmp.lt.s32.totalorder %v200, 1
    %vm220 = vcmp.lt.s32.totalorder %v200, 2
    %vm221 = vcmp.lt.s32.totalorder %v200, 3
    %vm222 = vcmp.lt.s32.totalorder %v200, 4
    %v223 = vsel %vm219, %v203, %v206
    %v224 = vsel %vm222, %v212, 2102212464
    %v225 = vsel %vm221, %v209, %v224
    %v226 = vsel %vm220, %v223, %v225
    %v227 = vsel %vm219, %v206, %v209
    %v228 = vsel %vm222, %v215, 920167782
    %v229 = vsel %vm221, %v212, %v228
    %v230 = vsel %vm220, %v227, %v229
    %v231 = vsel %vm219, %v209, %v212
    %v232 = vsel %vm222, %v218, 1326507024
    %v233 = vsel %vm221, %v215, %v232
    %v234 = vsel %vm220, %v231, %v233
    %v235 = vshll.u32 %v195, 8
    %v236 = vmul.u32.u64.compose %v235, %v234
    %v237 = vextract.low.u32 %v236
    %v238 = vextract.high.u32 %v236
    %v239 = vmul.u32.u64.compose %v235, %v230
    %v240 = vextract.low.u32 %v239
    %v241 = vextract.high.u32 %v239
    %v242 = vmul.u32 %v235, %v226
    %v243 = vadd.s32 %v238, %v240
    %vm244 = vc.u32 %v238, %v240
    %v245 = vadd.s32 %v241, 1
    %v246 = vsel %vm244, %v245, %v241
    %v247 = vadd.s32 %v242, %v246
    %v248 = vadd.s32 %v247, 536870912
    %v249 = vshrl.u32 %v248, 30
    %v250 = vshll.u32 %v249, 30
    %v251 = vsub.s32 %v247, %v250
    %vm252 = vcmp.lt.s32.totalorder %v251, 0
    %v253 = vsub.s32 0, %v251
    %v254 = vsel %vm252, %v253, %v251
    %v255 = vclz %v254
    %v256 = vsub.s32 %v255, 2
    %vm257 = vcmp.gt.s32.totalorder 0, %v256
    %v258 = vsel %vm257, 0, %v256
    %v259 = vsub.s32 32, %v258
    %v260 = vshll.u32 %v251, %v258
    %v261 = vshrl.u32 %v243, %v259
    %v262 = vor.u32 %v260, %v261
    %v263 = vsub.s32 4294967266, %v258
    %v264 = vadd.s32 %v263, 127
    %v265 = vshll.u32 %v264, 23
    %v266 = vor.u32 4788187, %v265
    %v267 = vand.u32 2147483647, %v266
    %v269 = vcvt.s32.f32 %v262
    %v270 = vmul.f32 %v269, %v267
    %v271 = vxor.u32 %v270, 2147483648
    %v272 = vsel %vm189, %v271, %v270
    %v273 = vsub.s32 4, %v249
    %v274 = vsel %vm189, %v273, %v249
    %v275 = vsel %vm188, %v81, %v272
    %v276 = vsel %vm188, 0, %v274
    %v277 = vcosq.f32.pop %v275
    %v278 = vsinq.f32.pop %v275
    %vm279 = vweird.f32 %v81
    %v280 = vand.u32 %v276, 3
    %vm281 = vcmp.lt.s32.totalorder %v280, 2
    %vm282 = vcmp.eq.s32.totalorder %v280, 0
    %v283 = vxor.u32 %v278, 2147483648
    %v284 = vsel %vm282, %v277, %v283
    %vm285 = vcmp.eq.s32.totalorder %v280, 2
    %v286 = vxor.u32 %v277, 2147483648
    %v287 = vsel %vm285, %v286, %v278
    %v288 = vsel %vm281, %v284, %v287
    %v289 = vsel %vm279, nan, %v288
    %v290 = vand.u32 2147483647, %v82
    %vm291 = vcmp.le.f32.partialorder %v290, 0.7853982
    %vm292 = vcmp.lt.s32.totalorder %v82, 0
    %v293 = vand.u32 %v82, 2139095040
    %v294 = vshrl.u32 %v293, 23
    %v295 = vsub.s32 %v294, 127
    %v296 = vand.u32 2147483647, %v82
    %v297 = vand.u32 %v296, 8388607
    %v298 = vor.u32 %v297, 8388608
    %v299 = vsub.s32 0, %v298
    %v300 = vadd.s32 %v295, 1
    %vm301 = vcmp.gt.s32.totalorder %v300, 0
    %v302 = vsel %vm301, %v300, 0
    %v303 = vshrl.u32 %v302, 5
    %v304 = vand.u32 %v302, 31
    %v305 = vsub.s32 32, %v304
    %v306 = vshrl.u32 683565275, %v305
    %v307 = vshll.u32 683565275, %v304
    %v308 = vshrl.u32 2475754826, %v305
    %v309 = vor.u32 %v307, %v308
    %v310 = vshll.u32 2475754826, %v304
    %v311 = vshrl.u32 2131351028, %v305
    %v312 = vor.u32 %v310, %v311
    %v313 = vshll.u32 2131351028, %v304
    %v314 = vshrl.u32 2102212464, %v305
    %v315 = vor.u32 %v313, %v314
    %v316 = vshll.u32 2102212464, %v304
    %v317 = vshrl.u32 920167782, %v305
    %v318 = vor.u32 %v316, %v317
    %v319 = vshll.u32 920167782, %v304
    %v320 = vshrl.u32 1326507024, %v305
    %v321 = vor.u32 %v319, %v320
    %vm322 = vcmp.lt.s32.totalorder %v303, 1
    %vm323 = vcmp.lt.s32.totalorder %v303, 2
    %vm324 = vcmp.lt.s32.totalorder %v303, 3
    %vm325 = vcmp.lt.s32.totalorder %v303, 4
    %v326 = vsel %vm322, %v306, %v309
    %v327 = vsel %vm325, %v315, 2102212464
    %v328 = vsel %vm324, %v312, %v327
    %v329 = vsel %vm323, %v326, %v328
    %v330 = vsel %vm322, %v309, %v312
    %v331 = vsel %vm325, %v318, 920167782
    %v332 = vsel %vm324, %v315, %v331
    %v333 = vsel %vm323, %v330, %v332
    %v334 = vsel %vm322, %v312, %v315
    %v335 = vsel %vm325, %v321, 1326507024
    %v336 = vsel %vm324, %v318, %v335
    %v337 = vsel %vm323, %v334, %v336
    %v338 = vshll.u32 %v298, 8
    %v339 = vmul.u32.u64.compose %v338, %v337
    %v340 = vextract.low.u32 %v339
    %v341 = vextract.high.u32 %v339
    %v342 = vmul.u32.u64.compose %v338, %v333
    %v343 = vextract.low.u32 %v342
    %v344 = vextract.high.u32 %v342
    %v345 = vmul.u32 %v338, %v329
    %v346 = vadd.s32 %v341, %v343
    %vm347 = vc.u32 %v341, %v343
    %v348 = vadd.s32 %v344, 1
    %v349 = vsel %vm347, %v348, %v344
    %v350 = vadd.s32 %v345, %v349
    %v351 = vadd.s32 %v350, 536870912
    %v352 = vshrl.u32 %v351, 30
    %v353 = vshll.u32 %v352, 30
    %v354 = vsub.s32 %v350, %v353
    %vm355 = vcmp.lt.s32.totalorder %v354, 0
    %v356 = vsub.s32 0, %v354
    %v357 = vsel %vm355, %v356, %v354
    %v358 = vclz %v357
    %v359 = vsub.s32 %v358, 2
    %vm360 = vcmp.gt.s32.totalorder 0, %v359
    %v361 = vsel %vm360, 0, %v359
    %v362 = vsub.s32 32, %v361
    %v363 = vshll.u32 %v354, %v361
    %v364 = vshrl.u32 %v346, %v362
    %v365 = vor.u32 %v363, %v364
    %v366 = vsub.s32 4294967266, %v361
    %v367 = vadd.s32 %v366, 127
    %v368 = vshll.u32 %v367, 23
    %v369 = vor.u32 4788187, %v368
    %v370 = vand.u32 2147483647, %v369
    %v372 = vcvt.s32.f32 %v365
    %v373 = vmul.f32 %v372, %v370
    %v374 = vxor.u32 %v373, 2147483648
    %v375 = vsel %vm292, %v374, %v373
    %v376 = vsub.s32 4, %v352
    %v377 = vsel %vm292, %v376, %v352
    %v378 = vsel %vm291, %v82, %v375
    %v379 = vsel %vm291, 0, %v377
    %v380 = vcosq.f32.pop %v378
    %v381 = vsinq.f32.pop %v378
    %vm382 = vweird.f32 %v82
    %v383 = vand.u32 %v379, 3
    %vm384 = vcmp.lt.s32.totalorder %v383, 2
    %vm385 = vcmp.eq.s32.totalorder %v383, 0
    %v386 = vxor.u32 %v381, 2147483648
    %v387 = vsel %vm385, %v380, %v386
    %vm388 = vcmp.eq.s32.totalorder %v383, 2
    %v389 = vxor.u32 %v380, 2147483648
    %v390 = vsel %vm388, %v389, %v381
    %v391 = vsel %vm384, %v387, %v390
    %v392 = vsel %vm382, nan, %v391
    %v393 = vand.u32 2147483647, %v83
    %vm394 = vcmp.le.f32.partialorder %v393, 0.7853982
    %vm395 = vcmp.lt.s32.totalorder %v83, 0
    %v396 = vand.u32 %v83, 2139095040
    %v397 = vshrl.u32 %v396, 23
    %v398 = vsub.s32 %v397, 127
    %v399 = vand.u32 2147483647, %v83
    %v400 = vand.u32 %v399, 8388607
    %v401 = vor.u32 %v400, 8388608
    %v402 = vsub.s32 0, %v401
    %v403 = vadd.s32 %v398, 1
    %vm404 = vcmp.gt.s32.totalorder %v403, 0
    %v405 = vsel %vm404, %v403, 0
    %v406 = vshrl.u32 %v405, 5
    %v407 = vand.u32 %v405, 31
    %v408 = vsub.s32 32, %v407
    %v409 = vshrl.u32 683565275, %v408
    %v410 = vshll.u32 683565275, %v407
    %v411 = vshrl.u32 2475754826, %v408
    %v412 = vor.u32 %v410, %v411
    %v413 = vshll.u32 2475754826, %v407
    %v414 = vshrl.u32 2131351028, %v408
    %v415 = vor.u32 %v413, %v414
    %v416 = vshll.u32 2131351028, %v407
    %v417 = vshrl.u32 2102212464, %v408
    %v418 = vor.u32 %v416, %v417
    %v419 = vshll.u32 2102212464, %v407
    %v420 = vshrl.u32 920167782, %v408
    %v421 = vor.u32 %v419, %v420
    %v422 = vshll.u32 920167782, %v407
    %v423 = vshrl.u32 1326507024, %v408
    %v424 = vor.u32 %v422, %v423
    %vm425 = vcmp.lt.s32.totalorder %v406, 1
    %vm426 = vcmp.lt.s32.totalorder %v406, 2
    %vm427 = vcmp.lt.s32.totalorder %v406, 3
    %vm428 = vcmp.lt.s32.totalorder %v406, 4
    %v429 = vsel %vm425, %v409, %v412
    %v430 = vsel %vm428, %v418, 2102212464
    %v431 = vsel %vm427, %v415, %v430
    %v432 = vsel %vm426, %v429, %v431
    %v433 = vsel %vm425, %v412, %v415
    %v434 = vsel %vm428, %v421, 920167782
    %v435 = vsel %vm427, %v418, %v434
    %v436 = vsel %vm426, %v433, %v435
    %v437 = vsel %vm425, %v415, %v418
    %v438 = vsel %vm428, %v424, 1326507024
    %v439 = vsel %vm427, %v421, %v438
    %v440 = vsel %vm426, %v437, %v439
    %v441 = vshll.u32 %v401, 8
    %v442 = vmul.u32.u64.compose %v441, %v440
    %v443 = vextract.low.u32 %v442
    %v444 = vextract.high.u32 %v442
    %v445 = vmul.u32.u64.compose %v441, %v436
    %v446 = vextract.low.u32 %v445
    %v447 = vextract.high.u32 %v445
    %v448 = vmul.u32 %v441, %v432
    %v449 = vadd.s32 %v444, %v446
    %vm450 = vc.u32 %v444, %v446
    %v451 = vadd.s32 %v447, 1
    %v452 = vsel %vm450, %v451, %v447
    %v453 = vadd.s32 %v448, %v452
    %v454 = vadd.s32 %v453, 536870912
    %v455 = vshrl.u32 %v454, 30
    %v456 = vshll.u32 %v455, 30
    %v457 = vsub.s32 %v453, %v456
    %vm458 = vcmp.lt.s32.totalorder %v457, 0
    %v459 = vsub.s32 0, %v457
    %v460 = vsel %vm458, %v459, %v457
    %v461 = vclz %v460
    %v462 = vsub.s32 %v461, 2
    %vm463 = vcmp.gt.s32.totalorder 0, %v462
    %v464 = vsel %vm463, 0, %v462
    %v465 = vsub.s32 32, %v464
    %v466 = vshll.u32 %v457, %v464
    %v467 = vshrl.u32 %v449, %v465
    %v468 = vor.u32 %v466, %v467
    %v469 = vsub.s32 4294967266, %v464
    %v470 = vadd.s32 %v469, 127
    %v471 = vshll.u32 %v470, 23
    %v472 = vor.u32 4788187, %v471
    %v473 = vand.u32 2147483647, %v472
    %v475 = vcvt.s32.f32 %v468
    %v476 = vmul.f32 %v475, %v473
    %v477 = vxor.u32 %v476, 2147483648
    %v478 = vsel %vm395, %v477, %v476
    %v479 = vsub.s32 4, %v455
    %v480 = vsel %vm395, %v479, %v455
    %v481 = vsel %vm394, %v83, %v478
    %v482 = vsel %vm394, 0, %v480
    %v483 = vcosq.f32.pop %v481
    %v484 = vsinq.f32.pop %v481
    %vm485 = vweird.f32 %v83
    %v486 = vand.u32 %v482, 3
    %vm487 = vcmp.lt.s32.totalorder %v486, 2
    %vm488 = vcmp.eq.s32.totalorder %v486, 0
    %v489 = vxor.u32 %v484, 2147483648
    %v490 = vsel %vm488, %v483, %v489
    %vm491 = vcmp.eq.s32.totalorder %v486, 2
    %v492 = vxor.u32 %v483, 2147483648
    %v493 = vsel %vm491, %v492, %v484
    %v494 = vsel %vm487, %v490, %v493
    %v495 = vsel %vm485, nan, %v494
    %v496 = vand.u32 2147483647, %v80
    %vm497 = vcmp.le.f32.partialorder %v496, 0.7853982
    %vm498 = vcmp.lt.s32.totalorder %v80, 0
    %v499 = vand.u32 %v80, 2139095040
    %v500 = vshrl.u32 %v499, 23
    %v501 = vsub.s32 %v500, 127
    %v502 = vand.u32 2147483647, %v80
    %v503 = vand.u32 %v502, 8388607
    %v504 = vor.u32 %v503, 8388608
    %v505 = vsub.s32 0, %v504
    %v506 = vadd.s32 %v501, 1
    %vm507 = vcmp.gt.s32.totalorder %v506, 0
    %v508 = vsel %vm507, %v506, 0
    %v509 = vshrl.u32 %v508, 5
    %v510 = vand.u32 %v508, 31
    %v511 = vsub.s32 32, %v510
    %v512 = vshrl.u32 683565275, %v511
    %v513 = vshll.u32 683565275, %v510
    %v514 = vshrl.u32 2475754826, %v511
    %v515 = vor.u32 %v513, %v514
    %v516 = vshll.u32 2475754826, %v510
    %v517 = vshrl.u32 2131351028, %v511
    %v518 = vor.u32 %v516, %v517
    %v519 = vshll.u32 2131351028, %v510
    %v520 = vshrl.u32 2102212464, %v511
    %v521 = vor.u32 %v519, %v520
    %v522 = vshll.u32 2102212464, %v510
    %v523 = vshrl.u32 920167782, %v511
    %v524 = vor.u32 %v522, %v523
    %v525 = vshll.u32 920167782, %v510
    %v526 = vshrl.u32 1326507024, %v511
    %v527 = vor.u32 %v525, %v526
    %vm528 = vcmp.lt.s32.totalorder %v509, 1
    %vm529 = vcmp.lt.s32.totalorder %v509, 2
    %vm530 = vcmp.lt.s32.totalorder %v509, 3
    %vm531 = vcmp.lt.s32.totalorder %v509, 4
    %v532 = vsel %vm528, %v512, %v515
    %v533 = vsel %vm531, %v521, 2102212464
    %v534 = vsel %vm530, %v518, %v533
    %v535 = vsel %vm529, %v532, %v534
    %v536 = vsel %vm528, %v515, %v518
    %v537 = vsel %vm531, %v524, 920167782
    %v538 = vsel %vm530, %v521, %v537
    %v539 = vsel %vm529, %v536, %v538
    %v540 = vsel %vm528, %v518, %v521
    %v541 = vsel %vm531, %v527, 1326507024
    %v542 = vsel %vm530, %v524, %v541
    %v543 = vsel %vm529, %v540, %v542
    %v544 = vshll.u32 %v504, 8
    %v545 = vmul.u32.u64.compose %v544, %v543
    %v546 = vextract.low.u32 %v545
    %v547 = vextract.high.u32 %v545
    %v548 = vmul.u32.u64.compose %v544, %v539
    %v549 = vextract.low.u32 %v548
    %v550 = vextract.high.u32 %v548
    %v551 = vmul.u32 %v544, %v535
    %v552 = vadd.s32 %v547, %v549
    %vm553 = vc.u32 %v547, %v549
    %v554 = vadd.s32 %v550, 1
    %v555 = vsel %vm553, %v554, %v550
    %v556 = vadd.s32 %v551, %v555
    %v557 = vadd.s32 %v556, 536870912
    %v558 = vshrl.u32 %v557, 30
    %v559 = vshll.u32 %v558, 30
    %v560 = vsub.s32 %v556, %v559
    %vm561 = vcmp.lt.s32.totalorder %v560, 0
    %v562 = vsub.s32 0, %v560
    %v563 = vsel %vm561, %v562, %v560
    %v564 = vclz %v563
    %v565 = vsub.s32 %v564, 2
    %vm566 = vcmp.gt.s32.totalorder 0, %v565
    %v567 = vsel %vm566, 0, %v565
    %v568 = vsub.s32 32, %v567
    %v569 = vshll.u32 %v560, %v567
    %v570 = vshrl.u32 %v552, %v568
    %v571 = vor.u32 %v569, %v570
    %v572 = vsub.s32 4294967266, %v567
    %v573 = vadd.s32 %v572, 127
    %v574 = vshll.u32 %v573, 23
    %v575 = vor.u32 4788187, %v574
    %v576 = vand.u32 2147483647, %v575
    %v578 = vcvt.s32.f32 %v571
    %v579 = vmul.f32 %v578, %v576
    %v580 = vxor.u32 %v579, 2147483648
    %v581 = vsel %vm498, %v580, %v579
    %v582 = vsub.s32 4, %v558
    %v583 = vsel %vm498, %v582, %v558
    %v584 = vsel %vm497, %v80, %v581
    %v585 = vsel %vm497, 0, %v583
    %v586 = vcosq.f32.pop %v584
    %v587 = vsinq.f32.pop %v584
    %vm588 = vweird.f32 %v80
    %v589 = vadd.s32 %v585, 3
    %v590 = vand.u32 %v589, 3
    %vm591 = vcmp.lt.s32.totalorder %v590, 2
    %vm592 = vcmp.eq.s32.totalorder %v590, 0
    %v593 = vxor.u32 %v587, 2147483648
    %v594 = vsel %vm592, %v586, %v593
    %vm595 = vcmp.eq.s32.totalorder %v590, 2
    %v596 = vxor.u32 %v586, 2147483648
    %v597 = vsel %vm595, %v596, %v587
    %v598 = vsel %vm591, %v594, %v597
    %v599 = vsel %vm588, nan, %v598
    %v600 = vand.u32 2147483647, %v81
    %vm601 = vcmp.le.f32.partialorder %v600, 0.7853982
    %vm602 = vcmp.lt.s32.totalorder %v81, 0
    %v603 = vand.u32 %v81, 2139095040
    %v604 = vshrl.u32 %v603, 23
    %v605 = vsub.s32 %v604, 127
    %v606 = vand.u32 2147483647, %v81
    %v607 = vand.u32 %v606, 8388607
    %v608 = vor.u32 %v607, 8388608
    %v609 = vsub.s32 0, %v608
    %v610 = vadd.s32 %v605, 1
    %vm611 = vcmp.gt.s32.totalorder %v610, 0
    %v612 = vsel %vm611, %v610, 0
    %v613 = vshrl.u32 %v612, 5
    %v614 = vand.u32 %v612, 31
    %v615 = vsub.s32 32, %v614
    %v616 = vshrl.u32 683565275, %v615
    %v617 = vshll.u32 683565275, %v614
    %v618 = vshrl.u32 2475754826, %v615
    %v619 = vor.u32 %v617, %v618
    %v620 = vshll.u32 2475754826, %v614
    %v621 = vshrl.u32 2131351028, %v615
    %v622 = vor.u32 %v620, %v621
    %v623 = vshll.u32 2131351028, %v614
    %v624 = vshrl.u32 2102212464, %v615
    %v625 = vor.u32 %v623, %v624
    %v626 = vshll.u32 2102212464, %v614
    %v627 = vshrl.u32 920167782, %v615
    %v628 = vor.u32 %v626, %v627
    %v629 = vshll.u32 920167782, %v614
    %v630 = vshrl.u32 1326507024, %v615
    %v631 = vor.u32 %v629, %v630
    %vm632 = vcmp.lt.s32.totalorder %v613, 1
    %vm633 = vcmp.lt.s32.totalorder %v613, 2
    %vm634 = vcmp.lt.s32.totalorder %v613, 3
    %vm635 = vcmp.lt.s32.totalorder %v613, 4
    %v636 = vsel %vm632, %v616, %v619
    %v637 = vsel %vm635, %v625, 2102212464
    %v638 = vsel %vm634, %v622, %v637
    %v639 = vsel %vm633, %v636, %v638
    %v640 = vsel %vm632, %v619, %v622
    %v641 = vsel %vm635, %v628, 920167782
    %v642 = vsel %vm634, %v625, %v641
    %v643 = vsel %vm633, %v640, %v642
    %v644 = vsel %vm632, %v622, %v625
    %v645 = vsel %vm635, %v631, 1326507024
    %v646 = vsel %vm634, %v628, %v645
    %v647 = vsel %vm633, %v644, %v646
    %v648 = vshll.u32 %v608, 8
    %v649 = vmul.u32.u64.compose %v648, %v647
    %v650 = vextract.low.u32 %v649
    %v651 = vextract.high.u32 %v649
    %v652 = vmul.u32.u64.compose %v648, %v643
    %v653 = vextract.low.u32 %v652
    %v654 = vextract.high.u32 %v652
    %v655 = vmul.u32 %v648, %v639
    %v656 = vadd.s32 %v651, %v653
    %vm657 = vc.u32 %v651, %v653
    %v658 = vadd.s32 %v654, 1
    %v659 = vsel %vm657, %v658, %v654
    %v660 = vadd.s32 %v655, %v659
    %v661 = vadd.s32 %v660, 536870912
    %v662 = vshrl.u32 %v661, 30
    %v663 = vshll.u32 %v662, 30
    %v664 = vsub.s32 %v660, %v663
    %vm665 = vcmp.lt.s32.totalorder %v664, 0
    %v666 = vsub.s32 0, %v664
    %v667 = vsel %vm665, %v666, %v664
    %v668 = vclz %v667
    %v669 = vsub.s32 %v668, 2
    %vm670 = vcmp.gt.s32.totalorder 0, %v669
    %v671 = vsel %vm670, 0, %v669
    %v672 = vsub.s32 32, %v671
    %v673 = vshll.u32 %v664, %v671
    %v674 = vshrl.u32 %v656, %v672
    %v675 = vor.u32 %v673, %v674
    %v676 = vsub.s32 4294967266, %v671
    %v677 = vadd.s32 %v676, 127
    %v678 = vshll.u32 %v677, 23
    %v679 = vor.u32 4788187, %v678
    %v680 = vand.u32 2147483647, %v679
    %v682 = vcvt.s32.f32 %v675
    %v683 = vmul.f32 %v682, %v680
    %v684 = vxor.u32 %v683, 2147483648
    %v685 = vsel %vm602, %v684, %v683
    %v686 = vsub.s32 4, %v662
    %v687 = vsel %vm602, %v686, %v662
    %v688 = vsel %vm601, %v81, %v685
    %v689 = vsel %vm601, 0, %v687
    %v690 = vcosq.f32.pop %v688
    %v691 = vsinq.f32.pop %v688
    %vm692 = vweird.f32 %v81
    %v693 = vadd.s32 %v689, 3
    %v694 = vand.u32 %v693, 3
    %vm695 = vcmp.lt.s32.totalorder %v694, 2
    %vm696 = vcmp.eq.s32.totalorder %v694, 0
    %v697 = vxor.u32 %v691, 2147483648
    %v698 = vsel %vm696, %v690, %v697
    %vm699 = vcmp.eq.s32.totalorder %v694, 2
    %v700 = vxor.u32 %v690, 2147483648
    %v701 = vsel %vm699, %v700, %v691
    %v702 = vsel %vm695, %v698, %v701
    %v703 = vsel %vm692, nan, %v702
    %v704 = vand.u32 2147483647, %v82
    %vm705 = vcmp.le.f32.partialorder %v704, 0.7853982
    %vm706 = vcmp.lt.s32.totalorder %v82, 0
    %v707 = vand.u32 %v82, 2139095040
    %v708 = vshrl.u32 %v707, 23
    %v709 = vsub.s32 %v708, 127
    %v710 = vand.u32 2147483647, %v82
    %v711 = vand.u32 %v710, 8388607
    %v712 = vor.u32 %v711, 8388608
    %v713 = vsub.s32 0, %v712
    %v714 = vadd.s32 %v709, 1
    %vm715 = vcmp.gt.s32.totalorder %v714, 0
    %v716 = vsel %vm715, %v714, 0
    %v717 = vshrl.u32 %v716, 5
    %v718 = vand.u32 %v716, 31
    %v719 = vsub.s32 32, %v718
    %v720 = vshrl.u32 683565275, %v719
    %v721 = vshll.u32 683565275, %v718
    %v722 = vshrl.u32 2475754826, %v719
    %v723 = vor.u32 %v721, %v722
    %v724 = vshll.u32 2475754826, %v718
    %v725 = vshrl.u32 2131351028, %v719
    %v726 = vor.u32 %v724, %v725
    %v727 = vshll.u32 2131351028, %v718
    %v728 = vshrl.u32 2102212464, %v719
    %v729 = vor.u32 %v727, %v728
    %v730 = vshll.u32 2102212464, %v718
    %v731 = vshrl.u32 920167782, %v719
    %v732 = vor.u32 %v730, %v731
    %v733 = vshll.u32 920167782, %v718
    %v734 = vshrl.u32 1326507024, %v719
    %v735 = vor.u32 %v733, %v734
    %vm736 = vcmp.lt.s32.totalorder %v717, 1
    %vm737 = vcmp.lt.s32.totalorder %v717, 2
    %vm738 = vcmp.lt.s32.totalorder %v717, 3
    %vm739 = vcmp.lt.s32.totalorder %v717, 4
    %v740 = vsel %vm736, %v720, %v723
    %v741 = vsel %vm739, %v729, 2102212464
    %v742 = vsel %vm738, %v726, %v741
    %v743 = vsel %vm737, %v740, %v742
    %v744 = vsel %vm736, %v723, %v726
    %v745 = vsel %vm739, %v732, 920167782
    %v746 = vsel %vm738, %v729, %v745
    %v747 = vsel %vm737, %v744, %v746
    %v748 = vsel %vm736, %v726, %v729
    %v749 = vsel %vm739, %v735, 1326507024
    %v750 = vsel %vm738, %v732, %v749
    %v751 = vsel %vm737, %v748, %v750
    %v752 = vshll.u32 %v712, 8
    %v753 = vmul.u32.u64.compose %v752, %v751
    %v754 = vextract.low.u32 %v753
    %v755 = vextract.high.u32 %v753
    %v756 = vmul.u32.u64.compose %v752, %v747
    %v757 = vextract.low.u32 %v756
    %v758 = vextract.high.u32 %v756
    %v759 = vmul.u32 %v752, %v743
    %v760 = vadd.s32 %v755, %v757
    %vm761 = vc.u32 %v755, %v757
    %v762 = vadd.s32 %v758, 1
    %v763 = vsel %vm761, %v762, %v758
    %v764 = vadd.s32 %v759, %v763
    %v765 = vadd.s32 %v764, 536870912
    %v766 = vshrl.u32 %v765, 30
    %v767 = vshll.u32 %v766, 30
    %v768 = vsub.s32 %v764, %v767
    %vm769 = vcmp.lt.s32.totalorder %v768, 0
    %v770 = vsub.s32 0, %v768
    %v771 = vsel %vm769, %v770, %v768
    %v772 = vclz %v771
    %v773 = vsub.s32 %v772, 2
    %vm774 = vcmp.gt.s32.totalorder 0, %v773
    %v775 = vsel %vm774, 0, %v773
    %v776 = vsub.s32 32, %v775
    %v777 = vshll.u32 %v768, %v775
    %v778 = vshrl.u32 %v760, %v776
    %v779 = vor.u32 %v777, %v778
    %v780 = vsub.s32 4294967266, %v775
    %v781 = vadd.s32 %v780, 127
    %v782 = vshll.u32 %v781, 23
    %v783 = vor.u32 4788187, %v782
    %v784 = vand.u32 2147483647, %v783
    %v786 = vcvt.s32.f32 %v779
    %v787 = vmul.f32 %v786, %v784
    %v788 = vxor.u32 %v787, 2147483648
    %v789 = vsel %vm706, %v788, %v787
    %v790 = vsub.s32 4, %v766
    %v791 = vsel %vm706, %v790, %v766
    %v792 = vsel %vm705, %v82, %v789
    %v793 = vsel %vm705, 0, %v791
    %v794 = vcosq.f32.pop %v792
    %v795 = vsinq.f32.pop %v792
    %vm796 = vweird.f32 %v82
    %v797 = vadd.s32 %v793, 3
    %v798 = vand.u32 %v797, 3
    %vm799 = vcmp.lt.s32.totalorder %v798, 2
    %vm800 = vcmp.eq.s32.totalorder %v798, 0
    %v801 = vxor.u32 %v795, 2147483648
    %v802 = vsel %vm800, %v794, %v801
    %vm803 = vcmp.eq.s32.totalorder %v798, 2
    %v804 = vxor.u32 %v794, 2147483648
    %v805 = vsel %vm803, %v804, %v795
    %v806 = vsel %vm799, %v802, %v805
    %v807 = vsel %vm796, nan, %v806
    %v808 = vand.u32 2147483647, %v83
    %vm809 = vcmp.le.f32.partialorder %v808, 0.7853982
    %vm810 = vcmp.lt.s32.totalorder %v83, 0
    %v811 = vand.u32 %v83, 2139095040
    %v812 = vshrl.u32 %v811, 23
    %v813 = vsub.s32 %v812, 127
    %v814 = vand.u32 2147483647, %v83
    %v815 = vand.u32 %v814, 8388607
    %v816 = vor.u32 %v815, 8388608
    %v817 = vsub.s32 0, %v816
    %v818 = vadd.s32 %v813, 1
    %vm819 = vcmp.gt.s32.totalorder %v818, 0
    %v820 = vsel %vm819, %v818, 0
    %v821 = vshrl.u32 %v820, 5
    %v822 = vand.u32 %v820, 31
    %v823 = vsub.s32 32, %v822
    %v824 = vshrl.u32 683565275, %v823
    %v825 = vshll.u32 683565275, %v822
    %v826 = vshrl.u32 2475754826, %v823
    %v827 = vor.u32 %v825, %v826
    %v828 = vshll.u32 2475754826, %v822
    %v829 = vshrl.u32 2131351028, %v823
    %v830 = vor.u32 %v828, %v829
    %v831 = vshll.u32 2131351028, %v822
    %v832 = vshrl.u32 2102212464, %v823
    %v833 = vor.u32 %v831, %v832
    %v834 = vshll.u32 2102212464, %v822
    %v835 = vshrl.u32 920167782, %v823
    %v836 = vor.u32 %v834, %v835
    %v837 = vshll.u32 920167782, %v822
    %v838 = vshrl.u32 1326507024, %v823
    %v839 = vor.u32 %v837, %v838
    %vm840 = vcmp.lt.s32.totalorder %v821, 1
    %vm841 = vcmp.lt.s32.totalorder %v821, 2
    %vm842 = vcmp.lt.s32.totalorder %v821, 3
    %vm843 = vcmp.lt.s32.totalorder %v821, 4
    %v844 = vsel %vm840, %v824, %v827
    %v845 = vsel %vm843, %v833, 2102212464
    %v846 = vsel %vm842, %v830, %v845
    %v847 = vsel %vm841, %v844, %v846
    %v848 = vsel %vm840, %v827, %v830
    %v849 = vsel %vm843, %v836, 920167782
    %v850 = vsel %vm842, %v833, %v849
    %v851 = vsel %vm841, %v848, %v850
    %v852 = vsel %vm840, %v830, %v833
    %v853 = vsel %vm843, %v839, 1326507024
    %v854 = vsel %vm842, %v836, %v853
    %v855 = vsel %vm841, %v852, %v854
    %v856 = vshll.u32 %v816, 8
    %v857 = vmul.u32.u64.compose %v856, %v855
    %v858 = vextract.low.u32 %v857
    %v859 = vextract.high.u32 %v857
    %v860 = vmul.u32.u64.compose %v856, %v851
    %v861 = vextract.low.u32 %v860
    %v862 = vextract.high.u32 %v860
    %v863 = vmul.u32 %v856, %v847
    %v864 = vadd.s32 %v859, %v861
    %vm865 = vc.u32 %v859, %v861
    %v866 = vadd.s32 %v862, 1
    %v867 = vsel %vm865, %v866, %v862
    %v868 = vadd.s32 %v863, %v867
    %v869 = vadd.s32 %v868, 536870912
    %v870 = vshrl.u32 %v869, 30
    %v871 = vshll.u32 %v870, 30
    %v872 = vsub.s32 %v868, %v871
    %vm873 = vcmp.lt.s32.totalorder %v872, 0
    %v874 = vsub.s32 0, %v872
    %v875 = vsel %vm873, %v874, %v872
    %v876 = vclz %v875
    %v877 = vsub.s32 %v876, 2
    %vm878 = vcmp.gt.s32.totalorder 0, %v877
    %v879 = vsel %vm878, 0, %v877
    %v880 = vsub.s32 32, %v879
    %v881 = vshll.u32 %v872, %v879
    %v882 = vshrl.u32 %v864, %v880
    %v883 = vor.u32 %v881, %v882
    %v884 = vsub.s32 4294967266, %v879
    %v885 = vadd.s32 %v884, 127
    %v886 = vshll.u32 %v885, 23
    %v887 = vor.u32 4788187, %v886
    %v888 = vand.u32 2147483647, %v887
    %v890 = vcvt.s32.f32 %v883
    %v891 = vmul.f32 %v890, %v888
    %v892 = vxor.u32 %v891, 2147483648
    %v893 = vsel %vm810, %v892, %v891
    %v894 = vsub.s32 4, %v870
    %v895 = vsel %vm810, %v894, %v870
    %v896 = vsel %vm809, %v83, %v893
    %v897 = vsel %vm809, 0, %v895
    %v898 = vcosq.f32.pop %v896
    %v899 = vsinq.f32.pop %v896
    %vm900 = vweird.f32 %v83
    %v901 = vadd.s32 %v897, 3
    %v902 = vand.u32 %v901, 3
    %vm903 = vcmp.lt.s32.totalorder %v902, 2
    %vm904 = vcmp.eq.s32.totalorder %v902, 0
    %v905 = vxor.u32 %v899, 2147483648
    %v906 = vsel %vm904, %v898, %v905
    %vm907 = vcmp.eq.s32.totalorder %v902, 2
    %v908 = vxor.u32 %v898, 2147483648
    %v909 = vsel %vm907, %v908, %v899
    %v910 = vsel %vm903, %v906, %v909
    %v911 = vsel %vm900, nan, %v910
    %916 = vrot.lane.b32.xlu0 %v186, 32
    %v917 = vpop.permute.xlu0 %916
    %918 = vrot.lane.b32.xlu0 %v289, 32
    %v919 = vpop.permute.xlu0 %918
    %920 = vrot.lane.b32.xlu0 %v392, 32
    %v921 = vpop.permute.xlu0 %920
    %922 = vrot.lane.b32.xlu0 %v495, 32
    %v923 = vpop.permute.xlu0 %922
    %vm928 = vcmask 261120
    %v929 = vsel %vm928, %v186, %v917
    %v930 = vsel %vm928, %v289, %v919
    %v931 = vsel %vm928, %v392, %v921
    %v932 = vsel %vm928, %v495, %v923
    %v933 = vpack.c.bf16 %v930, %v929
    %v934 = vpack.c.bf16 %v932, %v931
    %v935 = vsub.f32 0.0, %v599
    %v936 = vsub.f32 0.0, %v703
    %v937 = vsub.f32 0.0, %v807
    %v938 = vsub.f32 0.0, %v911
    %943 = vrot.lane.b32.xlu0 %v599, 32
    %v944 = vpop.permute.xlu0 %943
    %945 = vrot.lane.b32.xlu0 %v703, 32
    %v946 = vpop.permute.xlu0 %945
    %947 = vrot.lane.b32.xlu0 %v807, 32
    %v948 = vpop.permute.xlu0 %947
    %949 = vrot.lane.b32.xlu0 %v911, 32
    %v950 = vpop.permute.xlu0 %949
    %v955 = vsel %vm928, %v935, %v944
    %v956 = vsel %vm928, %v936, %v946
    %v957 = vsel %vm928, %v937, %v948
    %v958 = vsel %vm928, %v938, %v950
    %v959 = vpack.c.bf16 %v956, %v955
    %v960 = vpack.c.bf16 %v958, %v957
    %v961 = vld [vmem:[#allocation2] sm:$0xf]
    %v962 = vld [vmem:[#allocation2 + $0x4] sm:$0xf]
    %v963 = vld [vmem:[#allocation2 + $0x8] sm:$0xf]
    %v964 = vld [vmem:[#allocation2 + $0xc] sm:$0xf]
    %v965 = vld [vmem:[#allocation2 + $0x10] sm:$0xf]
    %v966 = vld [vmem:[#allocation2 + $0x14] sm:$0xf]
    %v967 = vld [vmem:[#allocation2 + $0x18] sm:$0xf]
    %v968 = vld [vmem:[#allocation2 + $0x1c] sm:$0xf]
    %v969 = vld [vmem:[#allocation2 + $0x20] sm:$0xf]
    %v970 = vld [vmem:[#allocation2 + $0x24] sm:$0xf]
    %v971 = vld [vmem:[#allocation2 + $0x28] sm:$0xf]
    %v972 = vld [vmem:[#allocation2 + $0x2c] sm:$0xf]
    %v973 = vld [vmem:[#allocation2 + $0x30] sm:$0xf]
    %v974 = vld [vmem:[#allocation2 + $0x34] sm:$0xf]
    %v975 = vld [vmem:[#allocation2 + $0x38] sm:$0xf]
    %v976 = vld [vmem:[#allocation2 + $0x3c] sm:$0xf]
    %v977 = vld [vmem:[#allocation5] sm:$0xf]
    %v978 = vld [vmem:[#allocation5 + $0x4] sm:$0xf]
    %v979 = vld [vmem:[#allocation5 + $0x8] sm:$0xf]
    %v980 = vld [vmem:[#allocation5 + $0xc] sm:$0xf]
    %v981 = vld [vmem:[#allocation5 + $0x10] sm:$0xf]
    %v982 = vld [vmem:[#allocation5 + $0x14] sm:$0xf]
    %v983 = vld [vmem:[#allocation5 + $0x18] sm:$0xf]
    %v984 = vld [vmem:[#allocation5 + $0x1c] sm:$0xf]
    %v985 = vld [vmem:[#allocation5 + $0x20] sm:$0xf]
    %v986 = vld [vmem:[#allocation5 + $0x24] sm:$0xf]
    %v987 = vld [vmem:[#allocation5 + $0x28] sm:$0xf]
    %v988 = vld [vmem:[#allocation5 + $0x2c] sm:$0xf]
    %v989 = vld [vmem:[#allocation5 + $0x30] sm:$0xf]
    %v990 = vld [vmem:[#allocation5 + $0x34] sm:$0xf]
    %v991 = vld [vmem:[#allocation5 + $0x38] sm:$0xf]
    %v992 = vld [vmem:[#allocation5 + $0x3c] sm:$0xf]
    %v995 = vunpack.c.l.b16 %v933
    %v996 = vunpack.c.h.b16 %v933
    %v997 = vunpack.c.l.b16 %v934
    %v998 = vunpack.c.h.b16 %v934
    %v999 = vpack.c.b16 %v995, %v995
    %v1000 = vpack.c.b16 %v996, %v996
    %v1001 = vpack.c.b16 %v997, %v997
    %v1002 = vpack.c.b16 %v998, %v998
    %v1007 = vmul.bf16 %v961, %v999
    %v1008 = vmul.bf16 %v962, %v1000
    %v1009 = vmul.bf16 %v963, %v999
    %v1010 = vmul.bf16 %v964, %v1000
    %v1011 = vmul.bf16 %v965, %v999
    %v1012 = vmul.bf16 %v966, %v1000
    %v1013 = vmul.bf16 %v967, %v999
    %v1014 = vmul.bf16 %v968, %v1000
    %v1015 = vmul.bf16 %v969, %v1001
    %v1016 = vmul.bf16 %v970, %v1002
    %v1017 = vmul.bf16 %v971, %v1001
    %v1018 = vmul.bf16 %v972, %v1002
    %v1019 = vmul.bf16 %v973, %v1001
    %v1020 = vmul.bf16 %v974, %v1002
    %v1021 = vmul.bf16 %v975, %v1001
    %v1022 = vmul.bf16 %v976, %v1002
    %v1039 = vunpack.c.l.b16 %v961
    %v1040 = vunpack.c.l.b16 %v962
    %v1041 = vunpack.c.l.b16 %v963
    %v1042 = vunpack.c.l.b16 %v964
    %v1043 = vunpack.c.l.b16 %v965
    %v1044 = vunpack.c.l.b16 %v966
    %v1045 = vunpack.c.l.b16 %v967
    %v1046 = vunpack.c.l.b16 %v968
    %v1047 = vunpack.c.l.b16 %v969
    %v1048 = vunpack.c.l.b16 %v970
    %v1049 = vunpack.c.l.b16 %v971
    %v1050 = vunpack.c.l.b16 %v972
    %v1051 = vunpack.c.l.b16 %v973
    %v1052 = vunpack.c.l.b16 %v974
    %v1053 = vunpack.c.l.b16 %v975
    %v1054 = vunpack.c.l.b16 %v976
    %v1055 = vpack.c.b16 %v1040, %v1039
    %v1056 = vpack.c.b16 %v1042, %v1041
    %v1057 = vpack.c.b16 %v1044, %v1043
    %v1058 = vpack.c.b16 %v1046, %v1045
    %v1059 = vpack.c.b16 %v1048, %v1047
    %v1060 = vpack.c.b16 %v1050, %v1049
    %v1061 = vpack.c.b16 %v1052, %v1051
    %v1062 = vpack.c.b16 %v1054, %v1053
    %1063 = vrot.lane.b32.xlu0 %v1055, 96
    %v1064 = vpop.permute.xlu0 %1063
    %1065 = vrot.lane.b32.xlu0 %v1056, 96
    %v1066 = vpop.permute.xlu0 %1065
    %1067 = vrot.lane.b32.xlu0 %v1057, 96
    %v1068 = vpop.permute.xlu0 %1067
    %1069 = vrot.lane.b32.xlu0 %v1058, 96
    %v1070 = vpop.permute.xlu0 %1069
    %1071 = vrot.lane.b32.xlu0 %v1059, 96
    %v1072 = vpop.permute.xlu0 %1071
    %1073 = vrot.lane.b32.xlu0 %v1060, 96
    %v1074 = vpop.permute.xlu0 %1073
    %1075 = vrot.lane.b32.xlu0 %v1061, 96
    %v1076 = vpop.permute.xlu0 %1075
    %1077 = vrot.lane.b32.xlu0 %v1062, 96
    %v1078 = vpop.permute.xlu0 %1077
    %1079 = vrot.lane.b32.xlu0 %v1055, 32
    %v1080 = vpop.permute.xlu0 %1079
    %1081 = vrot.lane.b32.xlu0 %v1056, 32
    %v1082 = vpop.permute.xlu0 %1081
    %1083 = vrot.lane.b32.xlu0 %v1057, 32
    %v1084 = vpop.permute.xlu0 %1083
    %1085 = vrot.lane.b32.xlu0 %v1058, 32
    %v1086 = vpop.permute.xlu0 %1085
    %1087 = vrot.lane.b32.xlu0 %v1059, 32
    %v1088 = vpop.permute.xlu0 %1087
    %1089 = vrot.lane.b32.xlu0 %v1060, 32
    %v1090 = vpop.permute.xlu0 %1089
    %1091 = vrot.lane.b32.xlu0 %v1061, 32
    %v1092 = vpop.permute.xlu0 %1091
    %1093 = vrot.lane.b32.xlu0 %v1062, 32
    %v1094 = vpop.permute.xlu0 %1093
    %v1097 = vsel %vm928, %v1064, %v1080
    %v1101 = vsel %vm928, %v1066, %v1082
    %v1105 = vsel %vm928, %v1068, %v1084
    %v1109 = vsel %vm928, %v1070, %v1086
    %v1113 = vsel %vm928, %v1072, %v1088
    %v1117 = vsel %vm928, %v1074, %v1090
    %v1121 = vsel %vm928, %v1076, %v1092
    %v1125 = vsel %vm928, %v1078, %v1094
    %v1127 = vmul.bf16 %v1097, %v959
    %v1128 = vmul.bf16 %v1101, %v959
    %v1129 = vmul.bf16 %v1105, %v959
    %v1130 = vmul.bf16 %v1109, %v959
    %v1131 = vmul.bf16 %v1113, %v960
    %v1132 = vmul.bf16 %v1117, %v960
    %v1133 = vmul.bf16 %v1121, %v960
    %v1134 = vmul.bf16 %v1125, %v960
    %v1143 = vunpack.c.l.b16 %v1127
    %v1144 = vunpack.c.h.b16 %v1127
    %v1145 = vunpack.c.l.b16 %v1128
    %v1146 = vunpack.c.h.b16 %v1128
    %v1147 = vunpack.c.l.b16 %v1129
    %v1148 = vunpack.c.h.b16 %v1129
    %v1149 = vunpack.c.l.b16 %v1130
    %v1150 = vunpack.c.h.b16 %v1130
    %v1151 = vunpack.c.l.b16 %v1131
    %v1152 = vunpack.c.h.b16 %v1131
    %v1153 = vunpack.c.l.b16 %v1132
    %v1154 = vunpack.c.h.b16 %v1132
    %v1155 = vunpack.c.l.b16 %v1133
    %v1156 = vunpack.c.h.b16 %v1133
    %v1157 = vunpack.c.l.b16 %v1134
    %v1158 = vunpack.c.h.b16 %v1134
    %v1159 = vpack.c.b16 %v1143, %v1143
    %v1160 = vpack.c.b16 %v1144, %v1144
    %v1161 = vpack.c.b16 %v1145, %v1145
    %v1162 = vpack.c.b16 %v1146, %v1146
    %v1163 = vpack.c.b16 %v1147, %v1147
    %v1164 = vpack.c.b16 %v1148, %v1148
    %v1165 = vpack.c.b16 %v1149, %v1149
    %v1166 = vpack.c.b16 %v1150, %v1150
    %v1167 = vpack.c.b16 %v1151, %v1151
    %v1168 = vpack.c.b16 %v1152, %v1152
    %v1169 = vpack.c.b16 %v1153, %v1153
    %v1170 = vpack.c.b16 %v1154, %v1154
    %v1171 = vpack.c.b16 %v1155, %v1155
    %v1172 = vpack.c.b16 %v1156, %v1156
    %v1173 = vpack.c.b16 %v1157, %v1157
    %v1174 = vpack.c.b16 %v1158, %v1158
    %v1191 = vadd.bf16 %v1007, %v1159
    %v1192 = vadd.bf16 %v1008, %v1160
    %v1193 = vadd.bf16 %v1009, %v1161
    %v1194 = vadd.bf16 %v1010, %v1162
    %v1195 = vadd.bf16 %v1011, %v1163
    %v1196 = vadd.bf16 %v1012, %v1164
    %v1197 = vadd.bf16 %v1013, %v1165
    %v1198 = vadd.bf16 %v1014, %v1166
    %v1199 = vadd.bf16 %v1015, %v1167
    %v1200 = vadd.bf16 %v1016, %v1168
    %v1201 = vadd.bf16 %v1017, %v1169
    %v1202 = vadd.bf16 %v1018, %v1170
    %v1203 = vadd.bf16 %v1019, %v1171
    %v1204 = vadd.bf16 %v1020, %v1172
    %v1205 = vadd.bf16 %v1021, %v1173
    %v1206 = vadd.bf16 %v1022, %v1174
    %vm1207 = vcmask 519168
    %1208 = vst.msk [vmem:[#allocation7] sm:$0xf] %vm1207, %v1191
    %1209 = vst.msk [vmem:[#allocation7 + $0x4] sm:$0xf] %vm1207, %v1192
    %1210 = vst.msk [vmem:[#allocation7 + $0x8] sm:$0xf] %vm1207, %v1193
    %1211 = vst.msk [vmem:[#allocation7 + $0xc] sm:$0xf] %vm1207, %v1194
    %1212 = vst.msk [vmem:[#allocation7 + $0x10] sm:$0xf] %vm1207, %v1195
    %1213 = vst.msk [vmem:[#allocation7 + $0x14] sm:$0xf] %vm1207, %v1196
    %1214 = vst.msk [vmem:[#allocation7 + $0x18] sm:$0xf] %vm1207, %v1197
    %1215 = vst.msk [vmem:[#allocation7 + $0x1c] sm:$0xf] %vm1207, %v1198
    %1216 = vst.msk [vmem:[#allocation7 + $0x20] sm:$0xf] %vm1207, %v1199
    %1217 = vst.msk [vmem:[#allocation7 + $0x24] sm:$0xf] %vm1207, %v1200
    %1218 = vst.msk [vmem:[#allocation7 + $0x28] sm:$0xf] %vm1207, %v1201
    %1219 = vst.msk [vmem:[#allocation7 + $0x2c] sm:$0xf] %vm1207, %v1202
    %1220 = vst.msk [vmem:[#allocation7 + $0x30] sm:$0xf] %vm1207, %v1203
    %1221 = vst.msk [vmem:[#allocation7 + $0x34] sm:$0xf] %vm1207, %v1204
    %1222 = vst.msk [vmem:[#allocation7 + $0x38] sm:$0xf] %vm1207, %v1205
    %1223 = vst.msk [vmem:[#allocation7 + $0x3c] sm:$0xf] %vm1207, %v1206
    %v1224 = vmul.bf16 %v977, %v999
    %v1225 = vmul.bf16 %v978, %v1000
    %v1226 = vmul.bf16 %v979, %v999
    %v1227 = vmul.bf16 %v980, %v1000
    %v1228 = vmul.bf16 %v981, %v999
    %v1229 = vmul.bf16 %v982, %v1000
    %v1230 = vmul.bf16 %v983, %v999
    %v1231 = vmul.bf16 %v984, %v1000
    %v1232 = vmul.bf16 %v985, %v1001
    %v1233 = vmul.bf16 %v986, %v1002
    %v1234 = vmul.bf16 %v987, %v1001
    %v1235 = vmul.bf16 %v988, %v1002
    %v1236 = vmul.bf16 %v989, %v1001
    %v1237 = vmul.bf16 %v990, %v1002
    %v1238 = vmul.bf16 %v991, %v1001
    %v1239 = vmul.bf16 %v992, %v1002
    %v1256 = vunpack.c.l.b16 %v977
    %v1257 = vunpack.c.l.b16 %v978
    %v1258 = vunpack.c.l.b16 %v979
    %v1259 = vunpack.c.l.b16 %v980
    %v1260 = vunpack.c.l.b16 %v981
    %v1261 = vunpack.c.l.b16 %v982
    %v1262 = vunpack.c.l.b16 %v983
    %v1263 = vunpack.c.l.b16 %v984
    %v1264 = vunpack.c.l.b16 %v985
    %v1265 = vunpack.c.l.b16 %v986
    %v1266 = vunpack.c.l.b16 %v987
    %v1267 = vunpack.c.l.b16 %v988
    %v1268 = vunpack.c.l.b16 %v989
    %v1269 = vunpack.c.l.b16 %v990
    %v1270 = vunpack.c.l.b16 %v991
    %v1271 = vunpack.c.l.b16 %v992
    %v1272 = vpack.c.b16 %v1257, %v1256
    %v1273 = vpack.c.b16 %v1259, %v1258
    %v1274 = vpack.c.b16 %v1261, %v1260
    %v1275 = vpack.c.b16 %v1263, %v1262
    %v1276 = vpack.c.b16 %v1265, %v1264
    %v1277 = vpack.c.b16 %v1267, %v1266
    %v1278 = vpack.c.b16 %v1269, %v1268
    %v1279 = vpack.c.b16 %v1271, %v1270
    %1280 = vrot.lane.b32.xlu0 %v1272, 96
    %v1281 = vpop.permute.xlu0 %1280
    %1282 = vrot.lane.b32.xlu0 %v1273, 96
    %v1283 = vpop.permute.xlu0 %1282
    %1284 = vrot.lane.b32.xlu0 %v1274, 96
    %v1285 = vpop.permute.xlu0 %1284
    %1286 = vrot.lane.b32.xlu0 %v1275, 96
    %v1287 = vpop.permute.xlu0 %1286
    %1288 = vrot.lane.b32.xlu0 %v1276, 96
    %v1289 = vpop.permute.xlu0 %1288
    %1290 = vrot.lane.b32.xlu0 %v1277, 96
    %v1291 = vpop.permute.xlu0 %1290
    %1292 = vrot.lane.b32.xlu0 %v1278, 96
    %v1293 = vpop.permute.xlu0 %1292
    %1294 = vrot.lane.b32.xlu0 %v1279, 96
    %v1295 = vpop.permute.xlu0 %1294
    %1296 = vrot.lane.b32.xlu0 %v1272, 32
    %v1297 = vpop.permute.xlu0 %1296
    %1298 = vrot.lane.b32.xlu0 %v1273, 32
    %v1299 = vpop.permute.xlu0 %1298
    %1300 = vrot.lane.b32.xlu0 %v1274, 32
    %v1301 = vpop.permute.xlu0 %1300
    %1302 = vrot.lane.b32.xlu0 %v1275, 32
    %v1303 = vpop.permute.xlu0 %1302
    %1304 = vrot.lane.b32.xlu0 %v1276, 32
    %v1305 = vpop.permute.xlu0 %1304
    %1306 = vrot.lane.b32.xlu0 %v1277, 32
    %v1307 = vpop.permute.xlu0 %1306
    %1308 = vrot.lane.b32.xlu0 %v1278, 32
    %v1309 = vpop.permute.xlu0 %1308
    %1310 = vrot.lane.b32.xlu0 %v1279, 32
    %v1311 = vpop.permute.xlu0 %1310
    %v1314 = vsel %vm928, %v1281, %v1297
    %v1318 = vsel %vm928, %v1283, %v1299
    %v1322 = vsel %vm928, %v1285, %v1301
    %v1326 = vsel %vm928, %v1287, %v1303
    %v1330 = vsel %vm928, %v1289, %v1305
    %v1334 = vsel %vm928, %v1291, %v1307
    %v1338 = vsel %vm928, %v1293, %v1309
    %v1342 = vsel %vm928, %v1295, %v1311
    %v1344 = vmul.bf16 %v1314, %v959
    %v1345 = vmul.bf16 %v1318, %v959
    %v1346 = vmul.bf16 %v1322, %v959
    %v1347 = vmul.bf16 %v1326, %v959
    %v1348 = vmul.bf16 %v1330, %v960
    %v1349 = vmul.bf16 %v1334, %v960
    %v1350 = vmul.bf16 %v1338, %v960
    %v1351 = vmul.bf16 %v1342, %v960
    %v1360 = vunpack.c.l.b16 %v1344
    %v1361 = vunpack.c.h.b16 %v1344
    %v1362 = vunpack.c.l.b16 %v1345
    %v1363 = vunpack.c.h.b16 %v1345
    %v1364 = vunpack.c.l.b16 %v1346
    %v1365 = vunpack.c.h.b16 %v1346
    %v1366 = vunpack.c.l.b16 %v1347
    %v1367 = vunpack.c.h.b16 %v1347
    %v1368 = vunpack.c.l.b16 %v1348
    %v1369 = vunpack.c.h.b16 %v1348
    %v1370 = vunpack.c.l.b16 %v1349
    %v1371 = vunpack.c.h.b16 %v1349
    %v1372 = vunpack.c.l.b16 %v1350
    %v1373 = vunpack.c.h.b16 %v1350
    %v1374 = vunpack.c.l.b16 %v1351
    %v1375 = vunpack.c.h.b16 %v1351
    %v1376 = vpack.c.b16 %v1360, %v1360
    %v1377 = vpack.c.b16 %v1361, %v1361
    %v1378 = vpack.c.b16 %v1362, %v1362
    %v1379 = vpack.c.b16 %v1363, %v1363
    %v1380 = vpack.c.b16 %v1364, %v1364
    %v1381 = vpack.c.b16 %v1365, %v1365
    %v1382 = vpack.c.b16 %v1366, %v1366
    %v1383 = vpack.c.b16 %v1367, %v1367
    %v1384 = vpack.c.b16 %v1368, %v1368
    %v1385 = vpack.c.b16 %v1369, %v1369
    %v1386 = vpack.c.b16 %v1370, %v1370
    %v1387 = vpack.c.b16 %v1371, %v1371
    %v1388 = vpack.c.b16 %v1372, %v1372
    %v1389 = vpack.c.b16 %v1373, %v1373
    %v1390 = vpack.c.b16 %v1374, %v1374
    %v1391 = vpack.c.b16 %v1375, %v1375
    %v1408 = vadd.bf16 %v1224, %v1376
    %v1409 = vadd.bf16 %v1225, %v1377
    %v1410 = vadd.bf16 %v1226, %v1378
    %v1411 = vadd.bf16 %v1227, %v1379
    %v1412 = vadd.bf16 %v1228, %v1380
    %v1413 = vadd.bf16 %v1229, %v1381
    %v1414 = vadd.bf16 %v1230, %v1382
    %v1415 = vadd.bf16 %v1231, %v1383
    %v1416 = vadd.bf16 %v1232, %v1384
    %v1417 = vadd.bf16 %v1233, %v1385
    %v1418 = vadd.bf16 %v1234, %v1386
    %v1419 = vadd.bf16 %v1235, %v1387
    %v1420 = vadd.bf16 %v1236, %v1388
    %v1421 = vadd.bf16 %v1237, %v1389
    %v1422 = vadd.bf16 %v1238, %v1390
    %v1423 = vadd.bf16 %v1239, %v1391
    %1424 = vst.msk [vmem:[#allocation8] sm:$0xf] %vm1207, %v1408
    %1425 = vst.msk [vmem:[#allocation8 + $0x4] sm:$0xf] %vm1207, %v1409
    %1426 = vst.msk [vmem:[#allocation8 + $0x8] sm:$0xf] %vm1207, %v1410
    %1427 = vst.msk [vmem:[#allocation8 + $0xc] sm:$0xf] %vm1207, %v1411
    %1428 = vst.msk [vmem:[#allocation8 + $0x10] sm:$0xf] %vm1207, %v1412
    %1429 = vst.msk [vmem:[#allocation8 + $0x14] sm:$0xf] %vm1207, %v1413
    %1430 = vst.msk [vmem:[#allocation8 + $0x18] sm:$0xf] %vm1207, %v1414
    %1431 = vst.msk [vmem:[#allocation8 + $0x1c] sm:$0xf] %vm1207, %v1415
    %1432 = vst.msk [vmem:[#allocation8 + $0x20] sm:$0xf] %vm1207, %v1416
    %1433 = vst.msk [vmem:[#allocation8 + $0x24] sm:$0xf] %vm1207, %v1417
    %1434 = vst.msk [vmem:[#allocation8 + $0x28] sm:$0xf] %vm1207, %v1418
    %1435 = vst.msk [vmem:[#allocation8 + $0x2c] sm:$0xf] %vm1207, %v1419
    %1436 = vst.msk [vmem:[#allocation8 + $0x30] sm:$0xf] %vm1207, %v1420
    %1437 = vst.msk [vmem:[#allocation8 + $0x34] sm:$0xf] %vm1207, %v1421
    %1438 = vst.msk [vmem:[#allocation8 + $0x38] sm:$0xf] %vm1207, %v1422
    %1439 = vst.msk [vmem:[#allocation8 + $0x3c] sm:$0xf] %vm1207, %v1423
    // Predicated region
    $region26: #{tpu_custom_call.1} parent=1 // pred_check
      _
    $region27: #{tpu_custom_call.1} parent=1 // pred_check_branch
      %1441 = sbr.rel (0) target = $region29
    $region28: #{tpu_custom_call.1} parent=1 // pred_region
      %s1443 = ssub.s32 1024, 1024
      %1444 = vsyncadd [#allocation4], %s1443
      %s1445 = sshll.u32 [#allocation7], 4
      %s1446 = int_to_ptr.vmem [resolvable:$true] %s1445
      %1451 = dma.vmem_to_hbm [thread:$0]  %s1446, 1024, %s4, [#allocation4], 64, 64, 4
    $region29: #{tpu_custom_call.1} parent=1 // pred_fallthru
      _
    // Predicated region
    $region30: #{tpu_custom_call.1} parent=1 // pred_check
      _
    $region31: #{tpu_custom_call.1} parent=1 // pred_check_branch
      %1453 = sbr.rel (0) target = $region33
    $region32: #{tpu_custom_call.1} parent=1 // pred_region
      %s1455 = ssub.s32 1024, 1024
      %1456 = vsyncadd [#allocation9], %s1455
      %s1457 = sshll.u32 [#allocation8], 4
      %s1458 = int_to_ptr.vmem [resolvable:$true] %s1457
      %1463 = dma.vmem_to_hbm [thread:$0]  %s1458, 1024, %s5, [#allocation9], 64, 64, 4
    $region33: #{tpu_custom_call.1} parent=1 // pred_fallthru
      _
    // Predicated region
    $region34: #{tpu_custom_call.1} parent=1 // pred_check
      _
    $region35: #{tpu_custom_call.1} parent=1 // pred_check_branch
      %1465 = sbr.rel (0) target = $region37
    $region36: #{tpu_custom_call.1} parent=1 // pred_region
      %1466 = dma.done [#allocation4], 1024
    $region37: #{tpu_custom_call.1} parent=1 // pred_fallthru
      _
    // Predicated region
    $region38: #{tpu_custom_call.1} parent=1 // pred_check
      _
    $region39: #{tpu_custom_call.1} parent=1 // pred_check_branch
      %1468 = sbr.rel (0) target = $region41
    $region40: #{tpu_custom_call.1} parent=1 // pred_region
      %1469 = dma.done [#allocation9], 1024
    $region41: #{tpu_custom_call.1} parent=1 // pred_fallthru
      _
    %1470 = vsyncpa [#allocation3], 1
    %1471 = vsyncpa [#allocation6], 1
    %1472 = vsyncpa [#allocation4], 1
    %1473 = vsyncpa [#allocation9], 1

</llo_original>
